<compile_context>
chip_gen: v7x
topology: tpu7x:2x2x1
jax: 0.10.0
libtpu: 0.0.40
codegen_flags: <defaults>
</compile_context>

<pallas_src>
import jax
import jax.numpy as jnp
from jax.experimental import pallas as pl
from jax.experimental.pallas import tpu as pltpu

LANES = 128
ROW_TILE_MAX = 8192   # 8192 * 128 * 4 B = 4 MiB per input per grid step
NUM_SPLITS = 2        # leading "parallel" axis -> both TensorCores on v7x


def _make_kernel(rt, acc_rows, rows, bps, blocks, has_dups):
    chunks = rt // acc_rows
    ragged = (rows % rt) != 0
    clean_blocks = blocks - 1 if ragged else blocks
    last_block = blocks - 1

    def reduce_to_slab(x):
        # Reduce the (rt, 128) tile to one (acc_rows, 128) slab: pure VPU adds,
        # no per-step cross-lane (XLU) reduction.  Reshape splits the sublane
        # axis on (8,128)-tile boundaries, so it is layout-free.
        if chunks == 1:
            return x
        return jnp.sum(x.reshape(chunks, acc_rows, LANES), axis=0)

    def kernel(y_ref, yp_ref, out_ref):
        c = pl.program_id(0)   # core-parallel split
        i = pl.program_id(1)   # reduction ("arbitrary") axis

        @pl.when(i == 0)
        def _():
            out_ref[...] = jnp.zeros_like(out_ref)

        # Keep all math in f32 (v5e has no bf16 VPU/EUP path).
        e = y_ref[...].astype(jnp.float32) - yp_ref[...].astype(jnp.float32)
        # XSigmoid: 2*e*sigmoid(e) - e  ==  e * tanh(e / 2)   (EUP tanh)
        f = e * jnp.tanh(0.5 * e)

        if not ragged and not has_dups:
            # Grid covers the rows exactly: hot path, no masks, no branches.
            out_ref[...] = out_ref[...] + reduce_to_slab(f)
        else:
            blk = c * bps + i

            @pl.when(blk < clean_blocks)
            def _():
                out_ref[...] = out_ref[...] + reduce_to_slab(f)

            if ragged:
                @pl.when(blk == last_block)
                def _():
                    # Only the single ragged block pays for the iota mask.
                    rid = blk * rt + jax.lax.broadcasted_iota(
                        jnp.int32, (rt, LANES), 0)
                    fm = jnp.where(rid < rows, f, 0.0)
                    out_ref[...] = out_ref[...] + reduce_to_slab(fm)
            # blk > last_block (clamped duplicate from the core split):
            # neither branch fires -> contributes nothing.

    return kernel


def xsigmoid_loss(y_t, y_prime_t, *, row_tile=ROW_TILE_MAX, num_splits=NUM_SPLITS):
    assert y_t.shape == y_prime_t.shape
    n = y_t.size

    fy = jnp.ravel(y_t)
    fyp = jnp.ravel(y_prime_t)

    pad = (-n) % LANES
    if pad:
        # TODO(synk): only hit when the total element count isn't a multiple of
        # 128; this is a full HBM copy of both inputs. Zero padding is
        # loss-neutral because f(0) = 0 and we divide by the true count.
        fy = jnp.pad(fy, (0, pad))
        fyp = jnp.pad(fyp, (0, pad))
    rows = (n + pad) // LANES
    y2 = fy.reshape(rows, LANES)
    yp2 = fyp.reshape(rows, LANES)

    # Row-tile: large, multiple of 8 (sublane tiling); full extent if tiny.
    if rows < 8:
        rt = rows
    else:
        rt = max(8, (min(row_tile, rows) // 8) * 8)
    acc_rows = min(8, rt)

    blocks = pl.cdiv(rows, rt)
    ns = max(1, min(num_splits, blocks))      # don't split tiny problems
    bps = pl.cdiv(blocks, ns)                 # blocks per split (inner axis)
    has_dups = (ns * bps) != blocks
    last_block = blocks - 1

    if has_dups:
        # Clamp so duplicated trailing (c, i) pairs read a valid block; their
        # contribution is skipped inside the kernel.
        def in_map(c, i):
            return (jnp.minimum(c * bps + i, last_block), 0)
    else:
        def in_map(c, i):
            return (c * bps + i, 0)

    out = pl.pallas_call(
        _make_kernel(rt, acc_rows, rows, bps, blocks, has_dups),
        out_shape=jax.ShapeDtypeStruct((ns * acc_rows, LANES), jnp.float32),
        grid_spec=pltpu.PrefetchScalarGridSpec(
            num_scalar_prefetch=0,
            grid=(ns, bps),
            in_specs=[
                pl.BlockSpec((rt, LANES), in_map),
                pl.BlockSpec((rt, LANES), in_map),
            ],
            # Output block index depends only on c, so it stays VMEM-resident
            # across the whole inner reduction axis: it *is* the accumulator.
            out_specs=pl.BlockSpec((acc_rows, LANES), lambda c, i: (c, 0)),
        ),
        compiler_params=pltpu.CompilerParams(
            dimension_semantics=("parallel", "arbitrary"),
            vmem_limit_bytes=32 * 1024 * 1024,
        ),
    )(y2, yp2)

    # Tiny epilogue reduce (a few KB) + mean by the TRUE element count.
    return (jnp.sum(out) / n).astype(y_t.dtype)


if __name__ == "__main__":
    key = jax.random.PRNGKey(0)
    k1, k2 = jax.random.split(key)
    # shapes consistent with a typical NCHW regression target
    y_t = jax.random.normal(k1, (2, 4, 16, 16), dtype=jnp.float32)
    y_prime_t = jax.random.normal(k2, (2, 4, 16, 16), dtype=jnp.float32)

    loss = xsigmoid_loss(y_t, y_prime_t)
    jax.block_until_ready(loss)

    # reference check in plain JAX (spec formula)
    e = y_t - y_prime_t
    ref = jnp.mean(2.0 * e * jax.nn.sigmoid(e) - e)
    assert jnp.allclose(loss, ref, rtol=1e-5, atol=1e-6), (loss, ref)

    # also exercise the ragged / core-split path with an odd size
    k3, k4 = jax.random.split(k1)
    a = jax.random.normal(k3, (3, 5, 17, 13), dtype=jnp.float32)
    b = jax.random.normal(k4, (3, 5, 17, 13), dtype=jnp.float32)
    loss2 = xsigmoid_loss(a, b)
    jax.block_until_ready(loss2)
    e2 = a - b
    ref2 = jnp.mean(2.0 * e2 * jax.nn.sigmoid(e2) - e2)
    assert jnp.allclose(loss2, ref2, rtol=1e-5, atol=1e-6), (loss2, ref2)

    print("KERNEL_OK")
</pallas_src>

<mosaic_0001>
module attributes {stable_mosaic.version = 11 : i64} {
  func.func @kernel(%arg0: i32, %arg1: i32, %arg2: memref<16x128xf32, #tpu.memory_space<vmem>>, %arg3: memref<16x128xf32, #tpu.memory_space<vmem>>, %arg4: memref<8x128xf32, #tpu.memory_space<vmem>>) attributes {dimension_semantics = [#tpu.dimension_semantics<parallel>, #tpu.dimension_semantics<arbitrary>], iteration_bounds = array<i64: 1, 1>, scalar_prefetch = 0 : i64, scratch_operands = 0 : i64, tpu.core_type = #tpu.core_type<tc>, window_params = [{transform_indices = @transform_0, window_bounds = array<i64: 16, 128>}, {transform_indices = @transform_1, window_bounds = array<i64: 16, 128>}, {transform_indices = @transform_2, window_bounds = array<i64: 8, 128>}]} {
    %c0_i32 = arith.constant 0 : i32
    %0 = arith.cmpi eq, %arg1, %c0_i32 : i32
    %1 = arith.extui %0 : i1 to i32
    %c0_i32_0 = arith.constant 0 : i32
    %2 = arith.cmpi ne, %1, %c0_i32_0 : i32
    scf.if %2 {
      %cst_9 = arith.constant 0.000000e+00 : f32
      %15 = vector.broadcast %cst_9 : f32 to vector<8x128xf32>
      %c0_10 = arith.constant 0 : index
      %c0_11 = arith.constant 0 : index
      %16 = vector.load %arg4[%c0_10, %c0_11] : memref<8x128xf32, #tpu.memory_space<vmem>>, vector<8x128xf32>
      tpu.vector_store %arg4[%c0_10, %c0_11], %15 {strides = array<i32>} : memref<8x128xf32, #tpu.memory_space<vmem>>, vector<8x128xf32>,
    } else {
    }
    %c0 = arith.constant 0 : index
    %c0_1 = arith.constant 0 : index
    %3 = vector.load %arg2[%c0, %c0_1] : memref<16x128xf32, #tpu.memory_space<vmem>>, vector<16x128xf32>
    %c0_2 = arith.constant 0 : index
    %c0_3 = arith.constant 0 : index
    %4 = vector.load %arg3[%c0_2, %c0_3] : memref<16x128xf32, #tpu.memory_space<vmem>>, vector<16x128xf32>
    %5 = arith.subf %3, %4 : vector<16x128xf32>
    %cst = arith.constant 5.000000e-01 : f32
    %6 = vector.broadcast %cst : f32 to vector<16x128xf32>
    %7 = arith.mulf %6, %5 : vector<16x128xf32>
    %8 = math.tanh %7 : vector<16x128xf32>
    %9 = arith.mulf %5, %8 : vector<16x128xf32>
    %c0_4 = arith.constant 0 : index
    %c0_5 = arith.constant 0 : index
    %10 = vector.load %arg4[%c0_4, %c0_5] : memref<8x128xf32, #tpu.memory_space<vmem>>, vector<8x128xf32>
    %11 = vector.shape_cast %9 : vector<16x128xf32> to vector<2x8x128xf32>
    %cst_6 = arith.constant dense<0.000000e+00> : vector<8x128xf32>
    %12 = vector.multi_reduction <add>, %11, %cst_6 [0] : vector<2x8x128xf32> to vector<8x128xf32>
    %13 = arith.addf %10, %12 : vector<8x128xf32>
    %c0_7 = arith.constant 0 : index
    %c0_8 = arith.constant 0 : index
    %14 = vector.load %arg4[%c0_7, %c0_8] : memref<8x128xf32, #tpu.memory_space<vmem>>, vector<8x128xf32>
    tpu.vector_store %arg4[%c0_7, %c0_8], %13 {strides = array<i32>} : memref<8x128xf32, #tpu.memory_space<vmem>>, vector<8x128xf32>,
    return
  }
  func.func @transform_0(%arg0: i32, %arg1: i32) -> (i32, i32) {
    %c1_i32 = arith.constant 1 : i32
    %0 = arith.muli %arg0, %c1_i32 : i32
    %1 = arith.addi %0, %arg1 : i32
    %c0_i32 = arith.constant 0 : i32
    %c0_i32_0 = arith.constant 0 : i32
    return %1, %c0_i32 : i32, i32
  }
  func.func @transform_1(%arg0: i32, %arg1: i32) -> (i32, i32) {
    %c1_i32 = arith.constant 1 : i32
    %0 = arith.muli %arg0, %c1_i32 : i32
    %1 = arith.addi %0, %arg1 : i32
    %c0_i32 = arith.constant 0 : i32
    %c0_i32_0 = arith.constant 0 : i32
    return %1, %c0_i32 : i32, i32
  }
  func.func @transform_2(%arg0: i32, %arg1: i32) -> (i32, i32) {
    %c0_i32 = arith.constant 0 : i32
    %c0_i32_0 = arith.constant 0 : i32
    return %arg0, %c0_i32 : i32, i32
  }
}

</mosaic_0001>

<llo_original>
// kernel: tpu_custom_call.1
$region0: #{tpu_custom_call.1}
  #allocation0 [shape = 'u32[]', space=smem, size = 0x4, offset = 0x4, fixed_abs, tag = 'smem constant byte address 0x4 - core index']
  #allocation1 [shape = 'u32[144,128]{1,0:T(1,128)}', space=vmem, size = 0x12000, scoped, tag = 'internal scratch']
  %s0 = inlined_call_operand.hbm [shape: f32[16,128], index: 0, kind: input, shape index: {}]
  %s1 = inlined_call_operand.hbm [shape: f32[16,128], index: 1, kind: input, shape index: {}]
  %s2 = inlined_call_operand.hbm [shape: f32[8,128], index: 2, kind: output, shape index: {}]
  %s3 = sld [smem:[#allocation0]]
  $region30: #{tpu_custom_call.1} parent=0
    _
  %s5 = ssub.s32 1, %s3
  %s6 = scalar_select 0, %s5, %s3
  $region1: #{tpu_custom_call.1} parent=0
    #allocation2 [shape = 'u8[8192]{0}', space=vmem, size = 0x2000, scoped, tag = 'input window, operand 0, single buffered']
    #allocation3 [shape = 's32[1]{0}', space=sflag, size = 0x4, scoped, tag = 'scoped memory for tpu_custom_call.1']
    #allocation4 [shape = 's32[1]{0}', space=sflag, size = 0x4, scoped, tag = 'scoped memory for tpu_custom_call.1']
    #allocation5 [shape = 'u8[8192]{0}', space=vmem, size = 0x2000, scoped, tag = 'input window, operand 1, single buffered']
    #allocation6 [shape = 's32[1]{0}', space=sflag, size = 0x4, scoped, tag = 'scoped memory for tpu_custom_call.1']
    #allocation7 [shape = 'u8[4096]{0}', space=vmem, size = 0x1000, scoped, tag = 'output window, operand 0, single buffered']
    %7 = vsyncpa [#allocation3], 0
    %8 = vsyncpa [#allocation6], 0
    %9 = vsyncpa [#allocation4], 0
    // Predicated region
    $region2: #{tpu_custom_call.1} parent=1 // pred_check
      _
    $region3: #{tpu_custom_call.1} parent=1 // pred_check_branch
      %11 = sbr.rel (0) target = $region5
    $region4: #{tpu_custom_call.1} parent=1 // pred_region
      %s12 = sadd.s32 0, 0
      %s13 = smul.u32 2, %s12
      %s15 = ssub.s32 256, 256
      %16 = vsyncadd [#allocation3], %s15
      %s17 = smul.addr %s13, 128
      %s18 = scalar_lea.hbm %s0, %s17
      %s19 = sshll.u32 [#allocation2], 4
      %s20 = int_to_ptr.vmem [resolvable:$true] %s19
      %25 = dma.hbm_to_vmem [thread:$0]  %s18, 256, %s20, [#allocation3], 128, 128, 8
    $region5: #{tpu_custom_call.1} parent=1 // pred_fallthru
      _
    // Predicated region
    $region6: #{tpu_custom_call.1} parent=1 // pred_check
      _
    $region7: #{tpu_custom_call.1} parent=1 // pred_check_branch
      %27 = sbr.rel (0) target = $region9
    $region8: #{tpu_custom_call.1} parent=1 // pred_region
      %s28 = sadd.s32 0, 0
      %s29 = smul.u32 2, %s28
      %s31 = ssub.s32 256, 256
      %32 = vsyncadd [#allocation6], %s31
      %s33 = smul.addr %s29, 128
      %s34 = scalar_lea.hbm %s1, %s33
      %s35 = sshll.u32 [#allocation5], 4
      %s36 = int_to_ptr.vmem [resolvable:$true] %s35
      %41 = dma.hbm_to_vmem [thread:$0]  %s34, 256, %s36, [#allocation6], 128, 128, 8
    $region9: #{tpu_custom_call.1} parent=1 // pred_fallthru
      _
    // Predicated region
    $region10: #{tpu_custom_call.1} parent=1 // pred_check
      _
    $region11: #{tpu_custom_call.1} parent=1 // pred_check_branch
      %43 = sbr.rel (0) target = $region13
    $region12: #{tpu_custom_call.1} parent=1 // pred_region
      %44 = dma.done [#allocation3], 256
    $region13: #{tpu_custom_call.1} parent=1 // pred_fallthru
      _
    // Predicated region
    $region14: #{tpu_custom_call.1} parent=1 // pred_check
      _
    $region15: #{tpu_custom_call.1} parent=1 // pred_check_branch
      %46 = sbr.rel (0) target = $region17
    $region16: #{tpu_custom_call.1} parent=1 // pred_region
      %47 = dma.done [#allocation6], 256
    $region17: #{tpu_custom_call.1} parent=1 // pred_fallthru
      _
    %s48 = sadd.s32 0, 0
    %s49 = smul.u32 2, %s48
    %s50 = sadd.s32 0, 0
    %s51 = smul.u32 2, %s50
    %p52 = scmp.eq.s32.totalorder 0, 0
    // Predicated region
    $region18: #{tpu_custom_call.1} parent=1 // pred_check
      %p53 = pneg %p52
    $region19: #{tpu_custom_call.1} parent=1 // pred_check_branch
      %55 = sbr.rel (%p53) target = $region21
    $region20: #{tpu_custom_call.1} parent=1 // pred_region
      %56 = vst [vmem:[#allocation7] sm:$0xff] 0.0
    $region21: #{tpu_custom_call.1} parent=1 // pred_fallthru
      _
    %v57 = vld [vmem:[#allocation2] sm:$0xff]
    %v58 = vld [vmem:[#allocation2 + $0x8] sm:$0xff]
    %v59 = vld [vmem:[#allocation5] sm:$0xff]
    %v60 = vld [vmem:[#allocation5 + $0x8] sm:$0xff]
    %v61 = vsub.f32 %v57, %v59
    %v62 = vsub.f32 %v58, %v60
    %v63 = vmul.f32 %v61, 0.5
    %v64 = vmul.f32 %v62, 0.5
    %v65 = vtanh.pop %v63
    %v66 = vtanh.pop %v64
    %v67 = vmul.f32 %v61, %v65
    %v68 = vmul.f32 %v62, %v66
    %v69 = vld [vmem:[#allocation7] sm:$0xff]
    %v70 = vadd.f32 %v67, %v68
    %v71 = vadd.f32 %v69, %v70
    %72 = vst [vmem:[#allocation7] sm:$0xff] %v71
    // Predicated region
    $region22: #{tpu_custom_call.1} parent=1 // pred_check
      _
    $region23: #{tpu_custom_call.1} parent=1 // pred_check_branch
      %74 = sbr.rel (0) target = $region25
    $region24: #{tpu_custom_call.1} parent=1 // pred_region
      %s76 = ssub.s32 128, 128
      %77 = vsyncadd [#allocation4], %s76
      %s79 = sshll.u32 [#allocation7], 4
      %s80 = int_to_ptr.vmem [resolvable:$true] %s79
      %82 = dma.vmem_to_hbm [thread:$0]  %s80, 128, %s2, [#allocation4]
    $region25: #{tpu_custom_call.1} parent=1 // pred_fallthru
      _
    // Predicated region
    $region26: #{tpu_custom_call.1} parent=1 // pred_check
      _
    $region27: #{tpu_custom_call.1} parent=1 // pred_check_branch
      %84 = sbr.rel (0) target = $region29
    $region28: #{tpu_custom_call.1} parent=1 // pred_region
      %85 = dma.done [#allocation4], 128
    $region29: #{tpu_custom_call.1} parent=1 // pred_fallthru
      _
    %86 = vsyncpa [#allocation3], 1
    %87 = vsyncpa [#allocation6], 1
    %88 = vsyncpa [#allocation4], 1

</llo_original>
